<compile_context>
chip_gen: v5e
topology: v5e:2x2
jax: 0.10.0
libtpu: 0.0.40
codegen_flags: <defaults>
</compile_context>

<pallas_src>
import jax
import jax.numpy as jnp
from jax.experimental import pallas as pl
from jax.experimental.pallas import tpu as pltpu

_MAX_DMA_CHUNKS = 8          # split large copies over several in-flight DMAs
_MIN_CHUNK_BYTES = 1 << 20   # don't bother splitting below ~1 MiB per chunk


def _make_hbm_copy_kernel(row_chunks):
    """Build an HBM->HBM identity-copy kernel.

    row_chunks: static list of (offset, length) along the leading axis, or
    None for a single whole-ref DMA.
    """
    if row_chunks is None:
        def kernel(x_hbm, o_hbm, sem):
            cp = pltpu.make_async_copy(x_hbm, o_hbm, sem.at[0])
            cp.start()
            cp.wait()
        return kernel

    def kernel(x_hbm, o_hbm, sem):
        # Start all chunked DMAs (static Python loop -> fully unrolled),
        # then wait for all of them.  Chunks are disjoint leading-axis slices,
        # so they can proceed concurrently on separate DMA engines.
        copies = []
        for i, (off, n) in enumerate(row_chunks):
            cp = pltpu.make_async_copy(
                x_hbm.at[pl.ds(off, n)],
                o_hbm.at[pl.ds(off, n)],
                sem.at[i],
            )
            cp.start()
            copies.append(cp)
        for cp in copies:
            cp.wait()
    return kernel


def base_connector_forward(x: jax.Array, *, materialize: bool = True) -> jax.Array:
    """Identity forward pass of BaseConnector.

    materialize=False: fastest possible "kernel" — zero HBM traffic, returns x.
    materialize=True (default, exercises the Pallas path): produces a fresh
    buffer via chunked HBM->HBM DMA (exactly 2x nbytes of HBM traffic).
    """
    if x.size == 0 or not materialize:
        return x
    if x.ndim == 0:
        # 0-d scalar: copy via a (1, 1) view.
        return base_connector_forward(x.reshape(1, 1),
                                      materialize=materialize).reshape(())

    nbytes = x.size * x.dtype.itemsize
    dim0 = x.shape[0]

    # Static chunk plan along the leading axis (no reshape, no padding).
    want = max(1, min(_MAX_DMA_CHUNKS, nbytes // _MIN_CHUNK_BYTES, dim0))
    if want == 1:
        row_chunks = None
        n_sems = 1
    else:
        base = (dim0 + want - 1) // want
        row_chunks = []
        off = 0
        while off < dim0:
            n = min(base, dim0 - off)
            row_chunks.append((off, n))
            off += n
        n_sems = len(row_chunks)

    out = pl.pallas_call(
        _make_hbm_copy_kernel(row_chunks),
        out_shape=jax.ShapeDtypeStruct(x.shape, x.dtype),
        in_specs=[pl.BlockSpec(memory_space=pl.ANY)],   # raw HBM ref, no auto-DMA
        out_specs=pl.BlockSpec(memory_space=pl.ANY),    # raw HBM ref, written via DMA
        scratch_shapes=[pltpu.SemaphoreType.DMA((n_sems,))],
        cost_estimate=pl.CostEstimate(
            flops=0, transcendentals=0, bytes_accessed=2 * nbytes),
    )(x)
    return out


if __name__ == "__main__":
    key = jax.random.PRNGKey(0)

    # Small NCHW input consistent with a typical connector input.
    # 2*4*16*16 f32 = 8 KiB -> single whole-ref DMA path.
    x = jax.random.normal(key, (2, 4, 16, 16), dtype=jnp.float32)
    y = jax.block_until_ready(base_connector_forward(x))
    assert y.shape == x.shape and y.dtype == x.dtype
    assert bool(jnp.all(y == x))

    # Slightly larger input to exercise the multi-chunk DMA path
    # (8*64*64*64 f32 = 8 MiB -> 8 concurrent leading-axis chunk DMAs).
    x2 = jax.random.normal(jax.random.PRNGKey(0), (8, 64, 64, 64),
                           dtype=jnp.float32)
    y2 = jax.block_until_ready(base_connector_forward(x2))
    assert y2.shape == x2.shape and y2.dtype == x2.dtype
    assert bool(jnp.all(y2 == x2))

    # Zero-traffic fast path (review item 1) is still identity-correct.
    y3 = base_connector_forward(x, materialize=False)
    assert y3 is x

    print("KERNEL_OK")
</pallas_src>

<mosaic_0001>
module attributes {stable_mosaic.version = 11 : i64} {
  func.func @kernel(%arg0: memref<2x4x16x16xf32, #tpu.memory_space<any>>, %arg1: memref<2x4x16x16xf32, #tpu.memory_space<any>>, %arg2: memref<1x!tpu.dma_semaphore, #tpu.memory_space<semaphore_mem>>) attributes {dimension_semantics = [], scalar_prefetch = 0 : i64, scratch_operands = 1 : i64, tpu.core_type = #tpu.core_type<tc>} {
    %c0_i32 = arith.constant 0 : i32
    %0 = tpu.memref_slice %arg2[%c0_i32] : memref<1x!tpu.dma_semaphore, #tpu.memory_space<semaphore_mem>> -> memref<1x!tpu.dma_semaphore, #tpu.memory_space<semaphore_mem>>
    %1 = tpu.memref_squeeze %0 : memref<1x!tpu.dma_semaphore, #tpu.memory_space<semaphore_mem>> -> memref<!tpu.dma_semaphore, #tpu.memory_space<semaphore_mem>>
    tpu.enqueue_dma source(%arg0 : memref<2x4x16x16xf32, #tpu.memory_space<any>>) target(%arg1 : memref<2x4x16x16xf32, #tpu.memory_space<any>>) target_semaphore(%1 : memref<!tpu.dma_semaphore, #tpu.memory_space<semaphore_mem>>)
    %c0_i32_0 = arith.constant 0 : i32
    %2 = tpu.memref_slice %arg2[%c0_i32_0] : memref<1x!tpu.dma_semaphore, #tpu.memory_space<semaphore_mem>> -> memref<1x!tpu.dma_semaphore, #tpu.memory_space<semaphore_mem>>
    %3 = tpu.memref_squeeze %2 : memref<1x!tpu.dma_semaphore, #tpu.memory_space<semaphore_mem>> -> memref<!tpu.dma_semaphore, #tpu.memory_space<semaphore_mem>>
    tpu.wait_dma2 semaphore(%3 : memref<!tpu.dma_semaphore, #tpu.memory_space<semaphore_mem>>) src(%arg0 : memref<2x4x16x16xf32, #tpu.memory_space<any>>) dst(%arg1 : memref<2x4x16x16xf32, #tpu.memory_space<any>>)
    return
  }
}

</mosaic_0001>

<llo_original>
// kernel: tpu_custom_call.1
$region0: #{tpu_custom_call.1}
  #allocation0 [shape = 'u32[]', space=smem, size = 0x4, offset = 0x4, fixed_abs, tag = 'smem constant byte address 0x4 - core index']
  #allocation1 [shape = 'u32[72,128]{1,0:T(1,128)}', space=vmem, size = 0x9000, scoped, tag = 'internal scratch']
  #allocation2 [shape = 's32[1]{0}', space=sflag, size = 0x4, scoped, tag = 'scratch operand']
  #allocation3 [shape = 's32[]', space=sflag, size = 0x4, offset = 0, fixed_abs, tag = 'sflag constant byte address 0x0 - dummy sync flag']
  #allocation4 [shape = 'u32[0]{0}', space=smem, size = 0, offset = 0, fixed_abs, tag = 'smem constant byte address 0x0 - null']
  %s0 = inlined_call_operand.hbm [shape: f32[2,4,16,16], index: 0, kind: input, shape index: {}]
  %s1 = inlined_call_operand.hbm [shape: f32[2,4,16,16], index: 1, kind: output, shape index: {}]
  %s2 = sld [smem:[#allocation0]]
  $region2: #{tpu_custom_call.1} parent=0
    _
  %s4 = ssub.s32 1, %s2
  %s5 = scalar_select 0, %s4, %s2
  %s7 = sshll.u32 1, 14
  %s8 = sxor.u32 4294967295, %s7
  %s10 = sshll.u32 %s0, 4
  %s11 = int_to_ptr.hbm [resolvable:$true] %s10
  %s12 = sshll.u32 %s1, 4
  %s13 = int_to_ptr.hbm [resolvable:$true] %s12
  %16 = dma.general %s11, 2048, %s13, [#allocation2], [#allocation3], [#allocation4], 0, 0
  %s17 = smul.u32 2, 4
  %s18 = smul.u32 %s17, 16
  %s19 = smul.u32 %s18, 1
  %s20 = sshll.u32 %s19, 4
  %21 = dma.done [#allocation2], %s20
  %22 = vsyncmov [#allocation2]
  %s23 = vpop.sfrf %22
  %p24 = scmp.eq.s32.totalorder %s23, 0
  %p25 = pneg %p24
  %27 = shalt.err (%p25)

</llo_original>
